<compile_context>
chip_gen: v7x
topology: tpu7x:2x2x1
jax: 0.10.0
libtpu: 0.0.40
codegen_flags: <defaults>
</compile_context>

<pallas_src>
import jax
import jax.numpy as jnp
from jax.experimental import pallas as pl
from jax.experimental.pallas import tpu as pltpu


def _round_up(x, m):
    return ((x + m - 1) // m) * m


def _make_kernel(d_inp):
    """Kernel: o = x @ w using an unrolled K=d_inp VPU broadcast-FMA chain."""

    def kernel(x_ref, w_ref, o_ref):
        # x_ref: (TM, d_inp)        VMEM (d_inp lane-padded by HW)
        # w_ref: (d_inp, d_model_p) VMEM (resident across grid steps)
        # o_ref: (TM, d_model_p)    VMEM (lane-dense, multiple of 128)
        x = x_ref[...].astype(jnp.float32)
        w = w_ref[...].astype(jnp.float32)
        acc = x[:, 0:1] * w[0:1, :]
        for k in range(1, d_inp):  # d_inp is a static Python constant (<= 6)
            acc = acc + x[:, k : k + 1] * w[k : k + 1, :]
        o_ref[...] = acc.astype(o_ref.dtype)

    return kernel


def time_feature_embedding(x, weight, *, tm_max=1024):
    """x: (B, L, d_inp) float32; weight: (d_model, d_inp) float32 (PyTorch layout)."""
    B, L, d_inp = x.shape
    d_model = weight.shape[0]
    M = B * L

    x2d = x.reshape(M, d_inp)

    # Transpose to (d_inp, d_model) so the kernel computes x @ W.T, and pad the
    # d_model axis up to a multiple of 128 for lane-dense (unmasked) stores.
    d_model_p = _round_up(d_model, 128)
    w_t = weight.T
    if d_model_p != d_model:
        w_t = jnp.pad(w_t, ((0, 0), (0, d_model_p - d_model)))

    # Row tile: full M if small, else a large multiple of 8 (pipelined grid).
    if M <= tm_max:
        TM = M  # full-extent block: always a legal block shape
    else:
        TM = tm_max  # multiple of 8; ragged last block handled by cdiv grid
    grid = (pl.cdiv(M, TM),)

    # Explicit VMEM budget (double-buffered in/out; x tile lane-pads 4 -> 128,
    # weight sublane-pads d_inp -> 8).  Cap below v7x's 64 MiB physical VMEM.
    x_tile_bytes = TM * 128 * 4
    o_tile_bytes = TM * d_model_p * 4
    w_bytes = 8 * d_model_p * 4
    est = 2 * (x_tile_bytes + o_tile_bytes + w_bytes)
    vmem_limit = int(min(64 * 1024 * 1024, max(2 * est, 16 * 1024 * 1024)))

    out2d = pl.pallas_call(
        _make_kernel(d_inp),
        out_shape=jax.ShapeDtypeStruct((M, d_model_p), x.dtype),
        grid_spec=pltpu.PrefetchScalarGridSpec(
            num_scalar_prefetch=0,
            grid=grid,
            in_specs=[
                # x: streamed row tiles
                pl.BlockSpec((TM, d_inp), lambda i: (i, 0)),
                # weight: whole array, constant block index -> stays resident
                pl.BlockSpec((d_inp, d_model_p), lambda i: (0, 0)),
            ],
            out_specs=pl.BlockSpec((TM, d_model_p), lambda i: (i, 0)),
        ),
        compiler_params=pltpu.CompilerParams(
            dimension_semantics=("parallel",),  # independent row tiles (megacore)
            vmem_limit_bytes=vmem_limit,
        ),
    )(x2d, w_t)

    if d_model_p != d_model:
        out2d = out2d[:, :d_model]
    return out2d.reshape(B, L, d_model)


if __name__ == "__main__":
    # freq='h' -> d_inp = 4 ; small d_model for the demo.
    B, L, d_inp, d_model = 2, 8, 4, 32

    key = jax.random.PRNGKey(0)
    kx, kw = jax.random.split(key)

    x = jax.random.normal(kx, (B, L, d_inp), dtype=jnp.float32)
    # Deterministic stand-in for nn.Linear's kaiming-uniform init.
    bound = 1.0 / (d_inp ** 0.5)
    weight = jax.random.uniform(
        kw, (d_model, d_inp), minval=-bound, maxval=bound, dtype=jnp.float32
    )

    out = time_feature_embedding(x, weight)
    out = jax.block_until_ready(out)

    # Reference check against plain JAX (== PyTorch x @ W.T).
    ref = jnp.einsum("bld,md->blm", x, weight)
    assert out.shape == (B, L, d_model)
    assert jnp.allclose(out, ref, atol=1e-5, rtol=1e-5)

    # Also exercise a shape large enough to require multiple row tiles.
    B2, L2, d_model2 = 4, 600, 256  # M = 2400 -> 3 tiles of TM=1024 (ragged last)
    kx2, kw2 = jax.random.split(jax.random.PRNGKey(1))
    x2 = jax.random.normal(kx2, (B2, L2, d_inp), dtype=jnp.float32)
    w2 = jax.random.uniform(
        kw2, (d_model2, d_inp), minval=-bound, maxval=bound, dtype=jnp.float32
    )
    out2 = jax.block_until_ready(time_feature_embedding(x2, w2))
    ref2 = jnp.einsum("bld,md->blm", x2, w2)
    assert out2.shape == (B2, L2, d_model2)
    assert jnp.allclose(out2, ref2, atol=1e-5, rtol=1e-5)

    print("KERNEL_OK")
</pallas_src>

<mosaic_0001>
module attributes {stable_mosaic.version = 11 : i64} {
  func.func @kernel(%arg0: i32, %arg1: memref<16x4xf32, #tpu.memory_space<vmem>>, %arg2: memref<4x128xf32, #tpu.memory_space<vmem>>, %arg3: memref<16x128xf32, #tpu.memory_space<vmem>>) attributes {dimension_semantics = [#tpu.dimension_semantics<parallel>], iteration_bounds = array<i64: 1>, scalar_prefetch = 0 : i64, scratch_operands = 0 : i64, tpu.core_type = #tpu.core_type<tc>, window_params = [{transform_indices = @transform_0, window_bounds = array<i64: 16, 4>}, {pipeline_mode = #tpu.pipeline_mode<synchronous>, transform_indices = @transform_1, window_bounds = array<i64: 4, 128>}, {transform_indices = @transform_2, window_bounds = array<i64: 16, 128>}]} {
    %c0 = arith.constant 0 : index
    %c0_0 = arith.constant 0 : index
    %0 = vector.load %arg1[%c0, %c0_0] : memref<16x4xf32, #tpu.memory_space<vmem>>, vector<16x4xf32>
    %c0_1 = arith.constant 0 : index
    %c0_2 = arith.constant 0 : index
    %1 = vector.load %arg2[%c0_1, %c0_2] : memref<4x128xf32, #tpu.memory_space<vmem>>, vector<4x128xf32>
    %2 = vector.extract_strided_slice %0 {offsets = [0, 0], sizes = [16, 1], strides = [1, 1]} : vector<16x4xf32> to vector<16x1xf32>
    %3 = vector.extract_strided_slice %1 {offsets = [0, 0], sizes = [1, 128], strides = [1, 1]} : vector<4x128xf32> to vector<1x128xf32>
    %4 = vector.broadcast %2 : vector<16x1xf32> to vector<16x128xf32>
    %5 = vector.broadcast %3 : vector<1x128xf32> to vector<16x128xf32>
    %6 = arith.mulf %4, %5 : vector<16x128xf32>
    %7 = vector.extract_strided_slice %0 {offsets = [0, 1], sizes = [16, 1], strides = [1, 1]} : vector<16x4xf32> to vector<16x1xf32>
    %8 = vector.extract_strided_slice %1 {offsets = [1, 0], sizes = [1, 128], strides = [1, 1]} : vector<4x128xf32> to vector<1x128xf32>
    %9 = vector.broadcast %7 : vector<16x1xf32> to vector<16x128xf32>
    %10 = vector.broadcast %8 : vector<1x128xf32> to vector<16x128xf32>
    %11 = arith.mulf %9, %10 : vector<16x128xf32>
    %12 = arith.addf %6, %11 : vector<16x128xf32>
    %13 = vector.extract_strided_slice %0 {offsets = [0, 2], sizes = [16, 1], strides = [1, 1]} : vector<16x4xf32> to vector<16x1xf32>
    %14 = vector.extract_strided_slice %1 {offsets = [2, 0], sizes = [1, 128], strides = [1, 1]} : vector<4x128xf32> to vector<1x128xf32>
    %15 = vector.broadcast %13 : vector<16x1xf32> to vector<16x128xf32>
    %16 = vector.broadcast %14 : vector<1x128xf32> to vector<16x128xf32>
    %17 = arith.mulf %15, %16 : vector<16x128xf32>
    %18 = arith.addf %12, %17 : vector<16x128xf32>
    %19 = vector.extract_strided_slice %0 {offsets = [0, 3], sizes = [16, 1], strides = [1, 1]} : vector<16x4xf32> to vector<16x1xf32>
    %20 = vector.extract_strided_slice %1 {offsets = [3, 0], sizes = [1, 128], strides = [1, 1]} : vector<4x128xf32> to vector<1x128xf32>
    %21 = vector.broadcast %19 : vector<16x1xf32> to vector<16x128xf32>
    %22 = vector.broadcast %20 : vector<1x128xf32> to vector<16x128xf32>
    %23 = arith.mulf %21, %22 : vector<16x128xf32>
    %24 = arith.addf %18, %23 : vector<16x128xf32>
    %c0_3 = arith.constant 0 : index
    %c0_4 = arith.constant 0 : index
    %25 = vector.load %arg3[%c0_3, %c0_4] : memref<16x128xf32, #tpu.memory_space<vmem>>, vector<16x128xf32>
    tpu.vector_store %arg3[%c0_3, %c0_4], %24 {strides = array<i32>} : memref<16x128xf32, #tpu.memory_space<vmem>>, vector<16x128xf32>,
    return
  }
  func.func @transform_0(%arg0: i32) -> (i32, i32) {
    %c0_i32 = arith.constant 0 : i32
    %c0_i32_0 = arith.constant 0 : i32
    return %arg0, %c0_i32 : i32, i32
  }
  func.func @transform_1(%arg0: i32) -> (i32, i32) {
    %c0_i32 = arith.constant 0 : i32
    %c0_i32_0 = arith.constant 0 : i32
    %c0_i32_1 = arith.constant 0 : i32
    return %c0_i32, %c0_i32_0 : i32, i32
  }
  func.func @transform_2(%arg0: i32) -> (i32, i32) {
    %c0_i32 = arith.constant 0 : i32
    %c0_i32_0 = arith.constant 0 : i32
    return %arg0, %c0_i32 : i32, i32
  }
}

</mosaic_0001>

<llo_original>
// kernel: tpu_custom_call.1
$region0: #{tpu_custom_call.1}
  #allocation0 [shape = 'u32[]', space=smem, size = 0x4, offset = 0x4, fixed_abs, tag = 'smem constant byte address 0x4 - core index']
  #allocation1 [shape = 'u32[144,128]{1,0:T(1,128)}', space=vmem, size = 0x12000, scoped, tag = 'internal scratch']
  %s0 = inlined_call_operand.vmem [shape: f32[16,4], index: 0, kind: input, shape index: {}]
  %s1 = inlined_call_operand.vmem [shape: f32[4,128], index: 1, kind: input, shape index: {}]
  %s2 = inlined_call_operand.hbm [shape: f32[16,128], index: 2, kind: output, shape index: {}]
  %s3 = sld [smem:[#allocation0]]
  $region18: #{tpu_custom_call.1} parent=0
    _
  %s5 = ssub.s32 1, %s3
  %s6 = scalar_select 0, %s5, %s3
  $region1: #{tpu_custom_call.1} parent=0
    #allocation2 [shape = 'u8[8192]{0}', space=vmem, size = 0x2000, scoped, tag = 'output window, operand 0, single buffered']
    #allocation3 [shape = 's32[1]{0}', space=sflag, size = 0x4, scoped, tag = 'scoped memory for tpu_custom_call.1']
    %7 = vsyncpa [#allocation3], 0
    // Predicated region
    $region2: #{tpu_custom_call.1} parent=1 // pred_check
      _
    $region3: #{tpu_custom_call.1} parent=1 // pred_check_branch
      %9 = sbr.rel (0) target = $region5
    $region4: #{tpu_custom_call.1} parent=1 // pred_region
      _
    $region5: #{tpu_custom_call.1} parent=1 // pred_fallthru
      _
    // Predicated region
    $region6: #{tpu_custom_call.1} parent=1 // pred_check
      _
    $region7: #{tpu_custom_call.1} parent=1 // pred_check_branch
      %11 = sbr.rel (0) target = $region9
    $region8: #{tpu_custom_call.1} parent=1 // pred_region
      _
    $region9: #{tpu_custom_call.1} parent=1 // pred_fallthru
      _
    %v12 = vld [vmem:[%s0] sm:$0xff]
    %v13 = vld [vmem:[%s0 + $0x8] sm:$0xff]
    %v14 = vld [vmem:[%s1] sm:$0xf]
    %16 = vset.pattern.permute.xlu0 0
    %17 = vperm.xlu0 %16, %v12
    %v18 = vpop.permute.xlu0 %17
    %21 = vset.pattern.permute.xlu0 0
    %22 = vperm.xlu0 %21, %v13
    %v23 = vpop.permute.xlu0 %22
    %v25 = vlaneseq
    %v26 = vshrl.u32 %v25, 7
    %v27 = vsub.s32 0, %v26
    %v28 = vrot.slane %v14, %v27
    %v29 = vmul.f32 %v18, %v28
    %v30 = vmul.f32 %v23, %v28
    %31 = vset.pattern.permute.xlu0 1
    %32 = vperm.xlu0 %31, %v12
    %v33 = vpop.permute.xlu0 %32
    %35 = vset.pattern.permute.xlu0 1
    %36 = vperm.xlu0 %35, %v13
    %v37 = vpop.permute.xlu0 %36
    %v39 = vlaneseq
    %v40 = vshrl.u32 %v39, 7
    %v41 = vsub.s32 1, %v40
    %v42 = vrot.slane %v14, %v41
    %v43 = vmul.f32 %v33, %v42
    %v44 = vmul.f32 %v37, %v42
    %v45 = vadd.f32 %v29, %v43
    %v46 = vadd.f32 %v30, %v44
    %47 = vset.pattern.permute.xlu0 2
    %48 = vperm.xlu0 %47, %v12
    %v49 = vpop.permute.xlu0 %48
    %51 = vset.pattern.permute.xlu0 2
    %52 = vperm.xlu0 %51, %v13
    %v53 = vpop.permute.xlu0 %52
    %v55 = vlaneseq
    %v56 = vshrl.u32 %v55, 7
    %v57 = vsub.s32 2, %v56
    %v58 = vrot.slane %v14, %v57
    %v59 = vmul.f32 %v49, %v58
    %v60 = vmul.f32 %v53, %v58
    %v61 = vadd.f32 %v45, %v59
    %v62 = vadd.f32 %v46, %v60
    %63 = vset.pattern.permute.xlu0 3
    %64 = vperm.xlu0 %63, %v12
    %v65 = vpop.permute.xlu0 %64
    %67 = vset.pattern.permute.xlu0 3
    %68 = vperm.xlu0 %67, %v13
    %v69 = vpop.permute.xlu0 %68
    %v71 = vlaneseq
    %v72 = vshrl.u32 %v71, 7
    %v73 = vsub.s32 3, %v72
    %v74 = vrot.slane %v14, %v73
    %v75 = vmul.f32 %v65, %v74
    %v76 = vmul.f32 %v69, %v74
    %v77 = vadd.f32 %v61, %v75
    %v78 = vadd.f32 %v62, %v76
    %79 = vst [vmem:[#allocation2] sm:$0xff] %v77
    %80 = vst [vmem:[#allocation2 + $0x8] sm:$0xff] %v78
    // Predicated region
    $region10: #{tpu_custom_call.1} parent=1 // pred_check
      _
    $region11: #{tpu_custom_call.1} parent=1 // pred_check_branch
      %82 = sbr.rel (0) target = $region13
    $region12: #{tpu_custom_call.1} parent=1 // pred_region
      %s84 = ssub.s32 256, 256
      %85 = vsyncadd [#allocation3], %s84
      %s86 = sshll.u32 [#allocation2], 4
      %s87 = int_to_ptr.vmem [resolvable:$true] %s86
      %92 = dma.vmem_to_hbm [thread:$0]  %s87, 256, %s2, [#allocation3], 128, 128, 8
    $region13: #{tpu_custom_call.1} parent=1 // pred_fallthru
      _
    // Predicated region
    $region14: #{tpu_custom_call.1} parent=1 // pred_check
      _
    $region15: #{tpu_custom_call.1} parent=1 // pred_check_branch
      %94 = sbr.rel (0) target = $region17
    $region16: #{tpu_custom_call.1} parent=1 // pred_region
      %95 = dma.done [#allocation3], 256
    $region17: #{tpu_custom_call.1} parent=1 // pred_fallthru
      _
    %96 = vsyncpa [#allocation3], 1

</llo_original>
